<compile_context>
chip_gen: v6e
topology: v6e:2x2x1
jax: 0.10.0
libtpu: 0.0.40
codegen_flags: <defaults>
</compile_context>

<pallas_src>
import functools

import jax
import jax.numpy as jnp
from jax.experimental import pallas as pl
from jax.experimental.pallas import tpu as pltpu

_LANE = 128
_SUBLANE = 8
_MAX_BLOCK_B = 1024   # per-tile row cap; VMEM footprint stays ~1-3 MiB
_SMALL_B = 512        # below this, never split the batch just for megacore

try:
    _DEVICE_KIND = jax.devices()[0].device_kind.lower()
except Exception:  # pragma: no cover - CPU/interpret fallback
    _DEVICE_KIND = ""
# v7x has 2 TensorCores per chip; v5e / v6e have 1.
_NUM_TC = 2 if "v7" in _DEVICE_KIND else 1


def _round_up(x, m):
    return (x + m - 1) // m * m


def _choose_block_b(B):
    """Balanced batch tiles: <=7 rows of padding; >= _NUM_TC tiles for big B."""
    num_tiles = pl.cdiv(B, _MAX_BLOCK_B)
    if _NUM_TC > 1 and B > _SMALL_B:
        # Give both v7x TensorCores whole tiles on the "parallel" batch axis.
        num_tiles = _round_up(max(num_tiles, _NUM_TC), _NUM_TC)
    block_b = _round_up(pl.cdiv(B, num_tiles), _SUBLANE)
    num_tiles = pl.cdiv(B, block_b)
    return block_b, num_tiles


def prepare_params(params, compute_dtype=jnp.bfloat16):
    """One-time parameter prep: pad hidden/action dims to 128 lanes and cast
    matmul operands to the MXU compute dtype.  Call once, reuse every step."""
    w1, b1, w2, b2, wm, bm, a_scale, a_bias = params
    obs, H = w1.shape
    A = wm.shape[1]
    cdt = jnp.dtype(compute_dtype)
    f32 = jnp.float32

    H_p = _round_up(H, _LANE)
    A_p = _round_up(A, _LANE)   # lane-dense output: unmasked stores in-kernel

    # Zero padding is exact: padded hidden units see zero weights + zero bias
    # (relu(0)=0); padded action lanes give tanh(0)*0+0=0 and are sliced off.
    w1p = jnp.pad(w1.astype(f32), ((0, 0), (0, H_p - H))).astype(cdt)          # (obs, H_p)
    b1p = jnp.pad(b1.astype(f32).reshape(1, -1), ((0, 0), (0, H_p - H)))       # (1, H_p)
    w2p = jnp.pad(w2.astype(f32), ((0, H_p - H), (0, H_p - H))).astype(cdt)    # (H_p, H_p)
    b2p = jnp.pad(b2.astype(f32).reshape(1, -1), ((0, 0), (0, H_p - H)))       # (1, H_p)
    wmp = jnp.pad(wm.astype(f32), ((0, H_p - H), (0, A_p - A))).astype(cdt)    # (H_p, A_p)
    bmp = jnp.pad(bm.astype(f32).reshape(1, -1), ((0, 0), (0, A_p - A)))       # (1, A_p)
    scp = jnp.pad(a_scale.astype(f32).reshape(1, -1), ((0, 0), (0, A_p - A)))  # (1, A_p)
    bip = jnp.pad(a_bias.astype(f32).reshape(1, -1), ((0, 0), (0, A_p - A)))   # (1, A_p)

    prepared = tuple(jax.device_put(t)
                     for t in (w1p, b1p, w2p, b2p, wmp, bmp, scp, bip))
    return prepared, A


def _actor_kernel(x_ref, w1_ref, b1_ref, w2_ref, b2_ref,
                  wm_ref, bm_ref, scale_ref, bias_ref, out_ref):
    cdt = w1_ref.dtype  # MXU compute dtype (bf16 by default, f32 optional)
    x = x_ref[...].astype(cdt)          # cast in-kernel (no wrapper-side cast)
    # fc1 + ReLU : MXU accumulates in f32; bias/ReLU on VPU in f32
    h1 = jnp.dot(x, w1_ref[...], preferred_element_type=jnp.float32)
    h1 = jnp.maximum(h1 + b1_ref[...], 0.0).astype(cdt)
    # fc2 + ReLU
    h2 = jnp.dot(h1, w2_ref[...], preferred_element_type=jnp.float32)
    h2 = jnp.maximum(h2 + b2_ref[...], 0.0).astype(cdt)
    # fc_mean
    mean = jnp.dot(h2, wm_ref[...], preferred_element_type=jnp.float32) + bm_ref[...]
    # deterministic action: tanh squash (EUP) + rescale; lane-dense f32 store
    out_ref[...] = (jnp.tanh(mean) * scale_ref[...] + bias_ref[...]).astype(out_ref.dtype)


@functools.partial(jax.jit, static_argnames=("num_actions", "block_b"))
def mu_forward(x, prepared, num_actions, block_b=None):
    """Deterministic action (mean) for each row of x, using prepared params."""
    w1p, b1p, w2p, b2p, wmp, bmp, scp, bip = prepared
    B, obs = x.shape
    H_p = w1p.shape[1]
    A_p = wmp.shape[1]
    cdt = jnp.dtype(w1p.dtype)

    if block_b is None:
        block_b, num_tiles = _choose_block_b(B)
    else:
        block_b = _round_up(int(block_b), _SUBLANE)
        num_tiles = pl.cdiv(B, block_b)
    B_p = block_b * num_tiles

    xp = x if B_p == B else jnp.pad(x, ((0, B_p - B), (0, 0)))

    def _const(shape):
        # Constant across the grid: single-buffered, block == full array.
        return pl.BlockSpec(shape, lambda i: (0, 0), pipeline_mode=pl.Buffered(1))

    in_specs = [
        pl.BlockSpec((block_b, obs), lambda i: (i, 0)),   # x (pipelined, obs unpadded)
        _const((obs, H_p)),                               # w1
        _const((1, H_p)),                                 # b1
        _const((H_p, H_p)),                               # w2
        _const((1, H_p)),                                 # b2
        _const((H_p, A_p)),                               # w_mean
        _const((1, A_p)),                                 # b_mean
        _const((1, A_p)),                                 # action_scale
        _const((1, A_p)),                                 # action_bias
    ]
    out_spec = pl.BlockSpec((block_b, A_p), lambda i: (i, 0))

    # Advisory cost so XLA can overlap neighbours around this tiny custom call.
    flops = 2 * B_p * (obs * H_p + H_p * H_p + H_p * A_p) + 4 * B_p * (2 * H_p + A_p)
    transcendentals = B_p * A_p  # tanh
    bytes_accessed = (
        B_p * obs * x.dtype.itemsize
        + (obs * H_p + H_p * H_p + H_p * A_p) * cdt.itemsize
        + (2 * H_p + 3 * A_p) * 4
        + B_p * A_p * 4
    )

    out = pl.pallas_call(
        _actor_kernel,
        out_shape=jax.ShapeDtypeStruct((B_p, A_p), jnp.float32),
        grid_spec=pltpu.PrefetchScalarGridSpec(
            num_scalar_prefetch=0,
            grid=(num_tiles,),
            in_specs=in_specs,
            out_specs=out_spec,
        ),
        compiler_params=pltpu.CompilerParams(
            dimension_semantics=("parallel",)),
        cost_estimate=pl.CostEstimate(
            flops=int(flops),
            transcendentals=int(transcendentals),
            bytes_accessed=int(bytes_accessed)),
    )(xp, w1p, b1p, w2p, b2p, wmp, bmp, scp, bip)

    return out[:B, :num_actions]


def _reference(x, params):
    w1, b1, w2, b2, wm, bm, a_scale, a_bias = params
    hp = jax.lax.Precision.HIGHEST
    h1 = jnp.maximum(jnp.dot(x, w1, precision=hp) + b1.reshape(1, -1), 0.0)
    h2 = jnp.maximum(jnp.dot(h1, w2, precision=hp) + b2.reshape(1, -1), 0.0)
    mean = jnp.dot(h2, wm, precision=hp) + bm.reshape(1, -1)
    return jnp.tanh(mean) * a_scale.reshape(1, -1) + a_bias.reshape(1, -1)


if __name__ == "__main__":
    key = jax.random.PRNGKey(0)
    B, OBS, H, A = 8, 32, 64, 8   # small shapes consistent with an MLP actor

    ks = jax.random.split(key, 8)
    w1 = jax.random.normal(ks[0], (OBS, H), jnp.float32) * (1.0 / jnp.sqrt(OBS))
    b1 = jax.random.normal(ks[1], (1, H), jnp.float32) * 0.01
    w2 = jax.random.normal(ks[2], (H, H), jnp.float32) * (1.0 / jnp.sqrt(H))
    b2 = jax.random.normal(ks[3], (1, H), jnp.float32) * 0.01
    wm = jax.random.normal(ks[4], (H, A), jnp.float32) * (1.0 / jnp.sqrt(H))
    bm = jax.random.normal(ks[5], (1, A), jnp.float32) * 0.01
    a_scale = jnp.ones((1, A), jnp.float32) * 2.0   # (high - low) / 2
    a_bias = jnp.zeros((1, A), jnp.float32)         # (high + low) / 2
    params = (w1, b1, w2, b2, wm, bm, a_scale, a_bias)

    # One-time parameter prep (padding + bf16 cast happen here, not per call).
    prep_bf16, num_actions = prepare_params(params, compute_dtype=jnp.bfloat16)
    prep_f32, _ = prepare_params(params, compute_dtype=jnp.float32)

    x = jax.random.normal(ks[6], (B, OBS), jnp.float32)

    # Default path: bf16 MXU operands, f32 accumulate.
    out = jax.block_until_ready(mu_forward(x, prep_bf16, num_actions))
    ref = _reference(x, params)
    assert out.shape == (B, A)
    assert jnp.allclose(out, ref, atol=5e-2, rtol=5e-2), "bf16 path mismatch vs reference"

    # Full-f32 matmul path (tighter check of the kernel structure).
    out_f32 = jax.block_until_ready(mu_forward(x, prep_f32, num_actions))
    assert jnp.allclose(out_f32, ref, atol=2e-2, rtol=2e-2), "f32 path mismatch vs reference"

    # Ragged, larger batch: exercises balanced tiling + small batch padding.
    xr = jax.random.normal(ks[7], (600, OBS), jnp.float32)
    out_r = jax.block_until_ready(mu_forward(xr, prep_bf16, num_actions))
    ref_r = _reference(xr, params)
    assert out_r.shape == (600, A)
    assert jnp.allclose(out_r, ref_r, atol=5e-2, rtol=5e-2), "ragged-batch mismatch vs reference"

    # Forced multi-tile grid (block_b override) exercises the pipelined path on
    # every chip generation regardless of the auto-sized single-step choice.
    out_mt = jax.block_until_ready(mu_forward(xr, prep_bf16, num_actions, block_b=256))
    assert jnp.allclose(out_mt, ref_r, atol=5e-2, rtol=5e-2), "multi-tile mismatch vs reference"

    # TODO(synk): the concrete Actor architecture was not provided with `Mu`;
    # this implements the standard SAC MLP actor's get_deterministic_action.
    print("KERNEL_OK")
</pallas_src>

<mosaic_0001>
module attributes {stable_mosaic.version = 11 : i64} {
  func.func @_actor_kernel(%arg0: i32, %arg1: memref<8x32xf32, #tpu.memory_space<vmem>>, %arg2: memref<32x128xbf16, #tpu.memory_space<vmem>>, %arg3: memref<1x128xf32, #tpu.memory_space<vmem>>, %arg4: memref<128x128xbf16, #tpu.memory_space<vmem>>, %arg5: memref<1x128xf32, #tpu.memory_space<vmem>>, %arg6: memref<128x128xbf16, #tpu.memory_space<vmem>>, %arg7: memref<1x128xf32, #tpu.memory_space<vmem>>, %arg8: memref<1x128xf32, #tpu.memory_space<vmem>>, %arg9: memref<1x128xf32, #tpu.memory_space<vmem>>, %arg10: memref<8x128xf32, #tpu.memory_space<vmem>>) attributes {dimension_semantics = [#tpu.dimension_semantics<parallel>], iteration_bounds = array<i64: 1>, scalar_prefetch = 0 : i64, scratch_operands = 0 : i64, tpu.core_type = #tpu.core_type<tc>, window_params = [{transform_indices = @transform_0, window_bounds = array<i64: 8, 32>}, {pipeline_mode = #tpu.pipeline_mode<synchronous>, transform_indices = @transform_1, window_bounds = array<i64: 32, 128>}, {pipeline_mode = #tpu.pipeline_mode<synchronous>, transform_indices = @transform_2, window_bounds = array<i64: 1, 128>}, {pipeline_mode = #tpu.pipeline_mode<synchronous>, transform_indices = @transform_3, window_bounds = array<i64: 128, 128>}, {pipeline_mode = #tpu.pipeline_mode<synchronous>, transform_indices = @transform_4, window_bounds = array<i64: 1, 128>}, {pipeline_mode = #tpu.pipeline_mode<synchronous>, transform_indices = @transform_5, window_bounds = array<i64: 128, 128>}, {pipeline_mode = #tpu.pipeline_mode<synchronous>, transform_indices = @transform_6, window_bounds = array<i64: 1, 128>}, {pipeline_mode = #tpu.pipeline_mode<synchronous>, transform_indices = @transform_7, window_bounds = array<i64: 1, 128>}, {pipeline_mode = #tpu.pipeline_mode<synchronous>, transform_indices = @transform_8, window_bounds = array<i64: 1, 128>}, {transform_indices = @transform_9, window_bounds = array<i64: 8, 128>}]} {
    %c0 = arith.constant 0 : index
    %c0_0 = arith.constant 0 : index
    %0 = vector.load %arg1[%c0, %c0_0] : memref<8x32xf32, #tpu.memory_space<vmem>>, vector<8x32xf32>
    %1 = arith.truncf %0 : vector<8x32xf32> to vector<8x32xbf16>
    %c0_1 = arith.constant 0 : index
    %c0_2 = arith.constant 0 : index
    %2 = vector.load %arg2[%c0_1, %c0_2] : memref<32x128xbf16, #tpu.memory_space<vmem>>, vector<32x128xbf16>
    %cst = arith.constant dense<0.000000e+00> : vector<8x128xf32>
    %3 = tpu.matmul %1, %2, %cst {dimension_numbers = #tpu.dot_dimension_numbers<[1], [0], [0], [1], [0, 0, 1, 1], [], []>} : vector<8x32xbf16>, vector<32x128xbf16>, vector<8x128xf32> -> vector<8x128xf32>
    %c0_3 = arith.constant 0 : index
    %c0_4 = arith.constant 0 : index
    %4 = vector.load %arg3[%c0_3, %c0_4] : memref<1x128xf32, #tpu.memory_space<vmem>>, vector<1x128xf32>
    %5 = vector.broadcast %4 : vector<1x128xf32> to vector<8x128xf32>
    %6 = arith.addf %3, %5 : vector<8x128xf32>
    %cst_5 = arith.constant 0.000000e+00 : f32
    %7 = vector.broadcast %cst_5 : f32 to vector<8x128xf32>
    %8 = arith.maximumf %6, %7 : vector<8x128xf32>
    %9 = arith.truncf %8 : vector<8x128xf32> to vector<8x128xbf16>
    %c0_6 = arith.constant 0 : index
    %c0_7 = arith.constant 0 : index
    %10 = vector.load %arg4[%c0_6, %c0_7] : memref<128x128xbf16, #tpu.memory_space<vmem>>, vector<128x128xbf16>
    %cst_8 = arith.constant dense<0.000000e+00> : vector<8x128xf32>
    %11 = tpu.matmul %9, %10, %cst_8 {dimension_numbers = #tpu.dot_dimension_numbers<[1], [0], [0], [1], [0, 0, 1, 1], [], []>} : vector<8x128xbf16>, vector<128x128xbf16>, vector<8x128xf32> -> vector<8x128xf32>
    %c0_9 = arith.constant 0 : index
    %c0_10 = arith.constant 0 : index
    %12 = vector.load %arg5[%c0_9, %c0_10] : memref<1x128xf32, #tpu.memory_space<vmem>>, vector<1x128xf32>
    %13 = vector.broadcast %12 : vector<1x128xf32> to vector<8x128xf32>
    %14 = arith.addf %11, %13 : vector<8x128xf32>
    %cst_11 = arith.constant 0.000000e+00 : f32
    %15 = vector.broadcast %cst_11 : f32 to vector<8x128xf32>
    %16 = arith.maximumf %14, %15 : vector<8x128xf32>
    %17 = arith.truncf %16 : vector<8x128xf32> to vector<8x128xbf16>
    %c0_12 = arith.constant 0 : index
    %c0_13 = arith.constant 0 : index
    %18 = vector.load %arg6[%c0_12, %c0_13] : memref<128x128xbf16, #tpu.memory_space<vmem>>, vector<128x128xbf16>
    %cst_14 = arith.constant dense<0.000000e+00> : vector<8x128xf32>
    %19 = tpu.matmul %17, %18, %cst_14 {dimension_numbers = #tpu.dot_dimension_numbers<[1], [0], [0], [1], [0, 0, 1, 1], [], []>} : vector<8x128xbf16>, vector<128x128xbf16>, vector<8x128xf32> -> vector<8x128xf32>
    %c0_15 = arith.constant 0 : index
    %c0_16 = arith.constant 0 : index
    %20 = vector.load %arg7[%c0_15, %c0_16] : memref<1x128xf32, #tpu.memory_space<vmem>>, vector<1x128xf32>
    %21 = vector.broadcast %20 : vector<1x128xf32> to vector<8x128xf32>
    %22 = arith.addf %19, %21 : vector<8x128xf32>
    %23 = math.tanh %22 : vector<8x128xf32>
    %c0_17 = arith.constant 0 : index
    %c0_18 = arith.constant 0 : index
    %24 = vector.load %arg8[%c0_17, %c0_18] : memref<1x128xf32, #tpu.memory_space<vmem>>, vector<1x128xf32>
    %25 = vector.broadcast %24 : vector<1x128xf32> to vector<8x128xf32>
    %26 = arith.mulf %23, %25 : vector<8x128xf32>
    %c0_19 = arith.constant 0 : index
    %c0_20 = arith.constant 0 : index
    %27 = vector.load %arg9[%c0_19, %c0_20] : memref<1x128xf32, #tpu.memory_space<vmem>>, vector<1x128xf32>
    %28 = vector.broadcast %27 : vector<1x128xf32> to vector<8x128xf32>
    %29 = arith.addf %26, %28 : vector<8x128xf32>
    %c0_21 = arith.constant 0 : index
    %c0_22 = arith.constant 0 : index
    %30 = vector.load %arg10[%c0_21, %c0_22] : memref<8x128xf32, #tpu.memory_space<vmem>>, vector<8x128xf32>
    tpu.vector_store %arg10[%c0_21, %c0_22], %29 {strides = array<i32>} : memref<8x128xf32, #tpu.memory_space<vmem>>, vector<8x128xf32>,
    return
  }
  func.func @transform_0(%arg0: i32) -> (i32, i32) {
    %c0_i32 = arith.constant 0 : i32
    %c0_i32_0 = arith.constant 0 : i32
    return %arg0, %c0_i32 : i32, i32
  }
  func.func @transform_1(%arg0: i32) -> (i32, i32) {
    %c0_i32 = arith.constant 0 : i32
    %c0_i32_0 = arith.constant 0 : i32
    %c0_i32_1 = arith.constant 0 : i32
    return %c0_i32, %c0_i32_0 : i32, i32
  }
  func.func @transform_2(%arg0: i32) -> (i32, i32) {
    %c0_i32 = arith.constant 0 : i32
    %c0_i32_0 = arith.constant 0 : i32
    %c0_i32_1 = arith.constant 0 : i32
    return %c0_i32, %c0_i32_0 : i32, i32
  }
  func.func @transform_3(%arg0: i32) -> (i32, i32) {
    %c0_i32 = arith.constant 0 : i32
    %c0_i32_0 = arith.constant 0 : i32
    %c0_i32_1 = arith.constant 0 : i32
    return %c0_i32, %c0_i32_0 : i32, i32
  }
  func.func @transform_4(%arg0: i32) -> (i32, i32) {
    %c0_i32 = arith.constant 0 : i32
    %c0_i32_0 = arith.constant 0 : i32
    %c0_i32_1 = arith.constant 0 : i32
    return %c0_i32, %c0_i32_0 : i32, i32
  }
  func.func @transform_5(%arg0: i32) -> (i32, i32) {
    %c0_i32 = arith.constant 0 : i32
    %c0_i32_0 = arith.constant 0 : i32
    %c0_i32_1 = arith.constant 0 : i32
    return %c0_i32, %c0_i32_0 : i32, i32
  }
  func.func @transform_6(%arg0: i32) -> (i32, i32) {
    %c0_i32 = arith.constant 0 : i32
    %c0_i32_0 = arith.constant 0 : i32
    %c0_i32_1 = arith.constant 0 : i32
    return %c0_i32, %c0_i32_0 : i32, i32
  }
  func.func @transform_7(%arg0: i32) -> (i32, i32) {
    %c0_i32 = arith.constant 0 : i32
    %c0_i32_0 = arith.constant 0 : i32
    %c0_i32_1 = arith.constant 0 : i32
    return %c0_i32, %c0_i32_0 : i32, i32
  }
  func.func @transform_8(%arg0: i32) -> (i32, i32) {
    %c0_i32 = arith.constant 0 : i32
    %c0_i32_0 = arith.constant 0 : i32
    %c0_i32_1 = arith.constant 0 : i32
    return %c0_i32, %c0_i32_0 : i32, i32
  }
  func.func @transform_9(%arg0: i32) -> (i32, i32) {
    %c0_i32 = arith.constant 0 : i32
    %c0_i32_0 = arith.constant 0 : i32
    return %arg0, %c0_i32 : i32, i32
  }
}

</mosaic_0001>

<llo_original>
// kernel: mu_forward.1
$region0: #{mu_forward.1}
  #allocation0 [shape = 'u32[]', space=smem, size = 0x4, offset = 0x4, fixed_abs, tag = 'smem constant byte address 0x4 - core index']
  #allocation1 [shape = 'u32[144,128]{1,0:T(1,128)}', space=vmem, size = 0x12000, scoped, tag = 'internal scratch']
  %s0 = inlined_call_operand.hbm [shape: f32[8,32], index: 0, kind: input, shape index: {}]
  %s1 = inlined_call_operand.hbm [shape: bf16[32,128], index: 1, kind: input, shape index: {}]
  %s2 = inlined_call_operand.vmem [shape: f32[1,128], index: 2, kind: input, shape index: {}]
  %s3 = inlined_call_operand.hbm [shape: bf16[128,128], index: 3, kind: input, shape index: {}]
  %s4 = inlined_call_operand.vmem [shape: f32[1,128], index: 4, kind: input, shape index: {}]
  %s5 = inlined_call_operand.hbm [shape: bf16[128,128], index: 5, kind: input, shape index: {}]
  %s6 = inlined_call_operand.vmem [shape: f32[1,128], index: 6, kind: input, shape index: {}]
  %s7 = inlined_call_operand.vmem [shape: f32[1,128], index: 7, kind: input, shape index: {}]
  %s8 = inlined_call_operand.vmem [shape: f32[1,128], index: 8, kind: input, shape index: {}]
  %s9 = inlined_call_operand.hbm [shape: f32[8,128], index: 9, kind: output, shape index: {}]
  %s10 = sld [smem:[#allocation0]]
  $region62: #{mu_forward.1} parent=0
    _
  %s12 = ssub.s32 1, %s10
  %s13 = scalar_select 0, %s12, %s10
  $region1: #{mu_forward.1} parent=0
    #allocation2 [shape = 'u8[4096]{0}', space=vmem, size = 0x1000, scoped, tag = 'input window, operand 0, single buffered']
    #allocation3 [shape = 's32[1]{0}', space=sflag, size = 0x4, scoped, tag = 'scoped memory for mu_forward.1']
    #allocation4 [shape = 's32[1]{0}', space=sflag, size = 0x4, scoped, tag = 'scoped memory for mu_forward.1']
    #allocation5 [shape = 'u8[8192]{0}', space=vmem, size = 0x2000, scoped, tag = 'input window, operand 1, single buffered']
    #allocation6 [shape = 's32[1]{0}', space=sflag, size = 0x4, scoped, tag = 'scoped memory for mu_forward.1']
    #allocation7 [shape = 'u8[32768]{0}', space=vmem, size = 0x8000, scoped, tag = 'input window, operand 3, single buffered']
    #allocation8 [shape = 'u8[32768]{0}', space=vmem, size = 0x8000, scoped, tag = 'input window, operand 5, single buffered']
    #allocation9 [shape = 's32[1]{0}', space=sflag, size = 0x4, scoped, tag = 'scoped memory for mu_forward.1']
    #allocation10 [shape = 'u8[4096]{0}', space=vmem, size = 0x1000, scoped, tag = 'output window, operand 0, single buffered']
    %14 = vsyncpa [#allocation3], 0
    %15 = vsyncpa [#allocation6], 0
    %16 = vsyncpa [#allocation9], 0
    %17 = vsyncpa [#allocation4], 0
    // Predicated region
    $region2: #{mu_forward.1} parent=1 // pred_check
      _
    $region3: #{mu_forward.1} parent=1 // pred_check_branch
      %19 = sbr.rel (0) target = $region5
    $region4: #{mu_forward.1} parent=1 // pred_region
      %s21 = ssub.s32 128, 128
      %22 = vsyncadd [#allocation3], %s21
      %s24 = sshll.u32 [#allocation2], 4
      %s25 = int_to_ptr.vmem [resolvable:$true] %s24
      %27 = dma.hbm_to_vmem [thread:$0]  %s0, 128, %s25, [#allocation3]
    $region5: #{mu_forward.1} parent=1 // pred_fallthru
      _
    // Predicated region
    $region6: #{mu_forward.1} parent=1 // pred_check
      _
    $region7: #{mu_forward.1} parent=1 // pred_check_branch
      %29 = sbr.rel (0) target = $region9
    $region8: #{mu_forward.1} parent=1 // pred_region
      %s31 = ssub.s32 256, 256
      %32 = vsyncadd [#allocation6], %s31
      %s33 = sshll.u32 [#allocation5], 4
      %s34 = int_to_ptr.vmem [resolvable:$true] %s33
      %39 = dma.hbm_to_vmem [thread:$0]  %s1, 256, %s34, [#allocation6], 64, 64, 4
    $region9: #{mu_forward.1} parent=1 // pred_fallthru
      _
    // Predicated region
    $region10: #{mu_forward.1} parent=1 // pred_check
      _
    $region11: #{mu_forward.1} parent=1 // pred_check_branch
      %41 = sbr.rel (0) target = $region13
    $region12: #{mu_forward.1} parent=1 // pred_region
      _
    $region13: #{mu_forward.1} parent=1 // pred_fallthru
      _
    // Predicated region
    $region14: #{mu_forward.1} parent=1 // pred_check
      _
    $region15: #{mu_forward.1} parent=1 // pred_check_branch
      %43 = sbr.rel (0) target = $region17
    $region16: #{mu_forward.1} parent=1 // pred_region
      %s45 = ssub.s32 1024, 1024
      %46 = vsyncadd [#allocation6], %s45
      %s47 = sshll.u32 [#allocation7], 4
      %s48 = int_to_ptr.vmem [resolvable:$true] %s47
      %53 = dma.hbm_to_vmem [thread:$0]  %s3, 1024, %s48, [#allocation6], 64, 64, 4
    $region17: #{mu_forward.1} parent=1 // pred_fallthru
      _
    // Predicated region
    $region18: #{mu_forward.1} parent=1 // pred_check
      _
    $region19: #{mu_forward.1} parent=1 // pred_check_branch
      %55 = sbr.rel (0) target = $region21
    $region20: #{mu_forward.1} parent=1 // pred_region
      _
    $region21: #{mu_forward.1} parent=1 // pred_fallthru
      _
    // Predicated region
    $region22: #{mu_forward.1} parent=1 // pred_check
      _
    $region23: #{mu_forward.1} parent=1 // pred_check_branch
      %57 = sbr.rel (0) target = $region25
    $region24: #{mu_forward.1} parent=1 // pred_region
      %s59 = ssub.s32 1024, 1024
      %60 = vsyncadd [#allocation9], %s59
      %s61 = sshll.u32 [#allocation8], 4
      %s62 = int_to_ptr.vmem [resolvable:$true] %s61
      %67 = dma.hbm_to_vmem [thread:$0]  %s5, 1024, %s62, [#allocation9], 64, 64, 4
    $region25: #{mu_forward.1} parent=1 // pred_fallthru
      _
    // Predicated region
    $region26: #{mu_forward.1} parent=1 // pred_check
      _
    $region27: #{mu_forward.1} parent=1 // pred_check_branch
      %69 = sbr.rel (0) target = $region29
    $region28: #{mu_forward.1} parent=1 // pred_region
      _
    $region29: #{mu_forward.1} parent=1 // pred_fallthru
      _
    // Predicated region
    $region30: #{mu_forward.1} parent=1 // pred_check
      _
    $region31: #{mu_forward.1} parent=1 // pred_check_branch
      %71 = sbr.rel (0) target = $region33
    $region32: #{mu_forward.1} parent=1 // pred_region
      _
    $region33: #{mu_forward.1} parent=1 // pred_fallthru
      _
    // Predicated region
    $region34: #{mu_forward.1} parent=1 // pred_check
      _
    $region35: #{mu_forward.1} parent=1 // pred_check_branch
      %73 = sbr.rel (0) target = $region37
    $region36: #{mu_forward.1} parent=1 // pred_region
      _
    $region37: #{mu_forward.1} parent=1 // pred_fallthru
      _
    // Predicated region
    $region38: #{mu_forward.1} parent=1 // pred_check
      _
    $region39: #{mu_forward.1} parent=1 // pred_check_branch
      %75 = sbr.rel (0) target = $region41
    $region40: #{mu_forward.1} parent=1 // pred_region
      %76 = dma.done [#allocation3], 128
    $region41: #{mu_forward.1} parent=1 // pred_fallthru
      _
    // Predicated region
    $region42: #{mu_forward.1} parent=1 // pred_check
      _
    $region43: #{mu_forward.1} parent=1 // pred_check_branch
      %78 = sbr.rel (0) target = $region45
    $region44: #{mu_forward.1} parent=1 // pred_region
      %79 = dma.done [#allocation6], 256
    $region45: #{mu_forward.1} parent=1 // pred_fallthru
      _
    // Predicated region
    $region46: #{mu_forward.1} parent=1 // pred_check
      _
    $region47: #{mu_forward.1} parent=1 // pred_check_branch
      %81 = sbr.rel (0) target = $region49
    $region48: #{mu_forward.1} parent=1 // pred_region
      %82 = dma.done [#allocation6], 1024
    $region49: #{mu_forward.1} parent=1 // pred_fallthru
      _
    // Predicated region
    $region50: #{mu_forward.1} parent=1 // pred_check
      _
    $region51: #{mu_forward.1} parent=1 // pred_check_branch
      %84 = sbr.rel (0) target = $region53
    $region52: #{mu_forward.1} parent=1 // pred_region
      %85 = dma.done [#allocation9], 1024
    $region53: #{mu_forward.1} parent=1 // pred_fallthru
      _
    %v87 = vld [vmem:[#allocation2] sm:$0xff]
    %v88 = vpack.c.bf16 %v87, %v87
    %v89 = vld [vmem:[#allocation5] sm:$0xf]
    %v90 = vld [vmem:[#allocation5 + $0x4] sm:$0xf]
    %v91 = vld [vmem:[#allocation5 + $0x8] sm:$0xf]
    %v92 = vld [vmem:[#allocation5 + $0xc] sm:$0xf]
    %v93 = vld [vmem:[%s2] sm:$0x1]
    %v95 = vlaneseq
    %v96 = vshrl.u32 %v95, 7
    %v97 = vsub.s32 0, %v96
    %v98 = vrot.slane %v93, %v97
    %v104 = vunpack.c.l.b16 %v89
    %v105 = vunpack.c.l.b16 %v90
    %v106 = vunpack.c.l.b16 %v91
    %v107 = vunpack.c.l.b16 %v92
    %v108 = vpack.c.b16 %v105, %v104
    %v109 = vpack.c.b16 %v107, %v106
    %vm112 = vcmask 261120
    %v114 = vsel %vm112, %v88, 0
    %116 = vmatprep.subr.bf16.mxu0 0
    %117 = vmatpush1.bf16.msra.mxu0 0
    %118 = vmatprep.subr.bf16.mxu0 0
    %119 = vmatpush1.bf16.msra.mxu0 0
    %120 = vmatprep.subr.bf16.mxu0 0
    %121 = vmatpush1.bf16.msra.mxu0 0
    %122 = vmatprep.subr.bf16.mxu0 0
    %123 = vmatpush1.bf16.msra.mxu0 0
    %124 = vmatprep.subr.bf16.mxu0 0
    %125 = vmatpush1.bf16.msra.mxu0 0
    %126 = vmatprep.subr.bf16.mxu0 0
    %127 = vmatpush1.bf16.msra.mxu0 0
    %128 = vmatprep.subr.bf16.mxu0 0
    %129 = vmatpush1.bf16.msra.mxu0 %v109
    %130 = vmatprep.subr.bf16.mxu0 0
    %131 = vmatpush1.bf16.msra.mxu0 %v108
    %132 = vmatprep.subr.bf16.mxu0 0
    %133 = vmatpush2.bf16.msra.mxu0 0
    %134 = vmatprep.subr.bf16.mxu0 0
    %135 = vmatpush2.bf16.msra.mxu0 0
    %136 = vmatprep.subr.bf16.mxu0 0
    %137 = vmatpush2.bf16.msra.mxu0 0
    %138 = vmatprep.subr.bf16.mxu0 0
    %139 = vmatpush2.bf16.msra.mxu0 0
    %140 = vmatprep.subr.bf16.mxu0 0
    %141 = vmatpush2.bf16.msra.mxu0 0
    %142 = vmatprep.subr.bf16.mxu0 0
    %143 = vmatpush2.bf16.msra.mxu0 0
    %144 = vmatprep.subr.bf16.mxu0 0
    %145 = vmatpush2.bf16.msra.mxu0 0
    %146 = vmatprep.subr.bf16.mxu0 0
    %147 = vmatpush2.bf16.msra.mxu0 0
    %148 = vmatprep.mubr.bf16.mxu0 0
    %149 = vmatmul.mubr.bf16.gmra.mxu0 %v114
    %v150 = vpop.f32.mrf.mxu0
    %v151 = vadd.f32 %v98, %v150
    %v152 = vpop.f32.mrf.mxu0
    %v153 = vpop.f32.mrf.mxu0
    %v154 = vpop.f32.mrf.mxu0
    %155 = vdwg.mxu0
    %v156 = vmax.f32 %v151, 0.0
    %v157 = vpack.c.bf16 %v156, %v156
    %v158 = vld [vmem:[#allocation7] sm:$0xf]
    %v159 = vld [vmem:[#allocation7 + $0x4] sm:$0xf]
    %v160 = vld [vmem:[#allocation7 + $0x8] sm:$0xf]
    %v161 = vld [vmem:[#allocation7 + $0xc] sm:$0xf]
    %v162 = vld [vmem:[#allocation7 + $0x10] sm:$0xf]
    %v163 = vld [vmem:[#allocation7 + $0x14] sm:$0xf]
    %v164 = vld [vmem:[#allocation7 + $0x18] sm:$0xf]
    %v165 = vld [vmem:[#allocation7 + $0x1c] sm:$0xf]
    %v166 = vld [vmem:[#allocation7 + $0x20] sm:$0xf]
    %v167 = vld [vmem:[#allocation7 + $0x24] sm:$0xf]
    %v168 = vld [vmem:[#allocation7 + $0x28] sm:$0xf]
    %v169 = vld [vmem:[#allocation7 + $0x2c] sm:$0xf]
    %v170 = vld [vmem:[#allocation7 + $0x30] sm:$0xf]
    %v171 = vld [vmem:[#allocation7 + $0x34] sm:$0xf]
    %v172 = vld [vmem:[#allocation7 + $0x38] sm:$0xf]
    %v173 = vld [vmem:[#allocation7 + $0x3c] sm:$0xf]
    %v174 = vld [vmem:[%s4] sm:$0x1]
    %v176 = vlaneseq
    %v177 = vshrl.u32 %v176, 7
    %v178 = vsub.s32 0, %v177
    %v179 = vrot.slane %v174, %v178
    %v197 = vunpack.c.l.b16 %v158
    %v198 = vunpack.c.l.b16 %v159
    %v199 = vunpack.c.l.b16 %v160
    %v200 = vunpack.c.l.b16 %v161
    %v201 = vunpack.c.l.b16 %v162
    %v202 = vunpack.c.l.b16 %v163
    %v203 = vunpack.c.l.b16 %v164
    %v204 = vunpack.c.l.b16 %v165
    %v205 = vunpack.c.l.b16 %v166
    %v206 = vunpack.c.l.b16 %v167
    %v207 = vunpack.c.l.b16 %v168
    %v208 = vunpack.c.l.b16 %v169
    %v209 = vunpack.c.l.b16 %v170
    %v210 = vunpack.c.l.b16 %v171
    %v211 = vunpack.c.l.b16 %v172
    %v212 = vunpack.c.l.b16 %v173
    %v213 = vpack.c.b16 %v198, %v197
    %v214 = vpack.c.b16 %v200, %v199
    %v215 = vpack.c.b16 %v202, %v201
    %v216 = vpack.c.b16 %v204, %v203
    %v217 = vpack.c.b16 %v206, %v205
    %v218 = vpack.c.b16 %v208, %v207
    %v219 = vpack.c.b16 %v210, %v209
    %v220 = vpack.c.b16 %v212, %v211
    %229 = vmatprep.subr.bf16.mxu0 0
    %230 = vmatpush1.bf16.msra.mxu0 %v220
    %231 = vmatprep.subr.bf16.mxu0 0
    %232 = vmatpush1.bf16.msra.mxu0 %v219
    %233 = vmatprep.subr.bf16.mxu0 0
    %234 = vmatpush1.bf16.msra.mxu0 %v218
    %235 = vmatprep.subr.bf16.mxu0 0
    %236 = vmatpush1.bf16.msra.mxu0 %v217
    %237 = vmatprep.subr.bf16.mxu0 0
    %238 = vmatpush1.bf16.msra.mxu0 %v216
    %239 = vmatprep.subr.bf16.mxu0 0
    %240 = vmatpush1.bf16.msra.mxu0 %v215
    %241 = vmatprep.subr.bf16.mxu0 0
    %242 = vmatpush1.bf16.msra.mxu0 %v214
    %243 = vmatprep.subr.bf16.mxu0 0
    %244 = vmatpush1.bf16.msra.mxu0 %v213
    %245 = vmatprep.subr.bf16.mxu0 0
    %246 = vmatpush2.bf16.msra.mxu0 0
    %247 = vmatprep.subr.bf16.mxu0 0
    %248 = vmatpush2.bf16.msra.mxu0 0
    %249 = vmatprep.subr.bf16.mxu0 0
    %250 = vmatpush2.bf16.msra.mxu0 0
    %251 = vmatprep.subr.bf16.mxu0 0
    %252 = vmatpush2.bf16.msra.mxu0 0
    %253 = vmatprep.subr.bf16.mxu0 0
    %254 = vmatpush2.bf16.msra.mxu0 0
    %255 = vmatprep.subr.bf16.mxu0 0
    %256 = vmatpush2.bf16.msra.mxu0 0
    %257 = vmatprep.subr.bf16.mxu0 0
    %258 = vmatpush2.bf16.msra.mxu0 0
    %259 = vmatprep.subr.bf16.mxu0 0
    %260 = vmatpush2.bf16.msra.mxu0 0
    %261 = vmatprep.mubr.bf16.mxu0 0
    %262 = vmatmul.mubr.bf16.gmra.mxu0 %v157
    %v263 = vpop.f32.mrf.mxu0
    %v264 = vadd.f32 %v179, %v263
    %v265 = vpop.f32.mrf.mxu0
    %v266 = vpop.f32.mrf.mxu0
    %v267 = vpop.f32.mrf.mxu0
    %268 = vdwg.mxu0
    %v269 = vmax.f32 %v264, 0.0
    %v270 = vpack.c.bf16 %v269, %v269
    %v271 = vld [vmem:[#allocation8] sm:$0xf]
    %v272 = vld [vmem:[#allocation8 + $0x4] sm:$0xf]
    %v273 = vld [vmem:[#allocation8 + $0x8] sm:$0xf]
    %v274 = vld [vmem:[#allocation8 + $0xc] sm:$0xf]
    %v275 = vld [vmem:[#allocation8 + $0x10] sm:$0xf]
    %v276 = vld [vmem:[#allocation8 + $0x14] sm:$0xf]
    %v277 = vld [vmem:[#allocation8 + $0x18] sm:$0xf]
    %v278 = vld [vmem:[#allocation8 + $0x1c] sm:$0xf]
    %v279 = vld [vmem:[#allocation8 + $0x20] sm:$0xf]
    %v280 = vld [vmem:[#allocation8 + $0x24] sm:$0xf]
    %v281 = vld [vmem:[#allocation8 + $0x28] sm:$0xf]
    %v282 = vld [vmem:[#allocation8 + $0x2c] sm:$0xf]
    %v283 = vld [vmem:[#allocation8 + $0x30] sm:$0xf]
    %v284 = vld [vmem:[#allocation8 + $0x34] sm:$0xf]
    %v285 = vld [vmem:[#allocation8 + $0x38] sm:$0xf]
    %v286 = vld [vmem:[#allocation8 + $0x3c] sm:$0xf]
    %v287 = vld [vmem:[%s6] sm:$0x1]
    %v289 = vlaneseq
    %v290 = vshrl.u32 %v289, 7
    %v291 = vsub.s32 0, %v290
    %v292 = vrot.slane %v287, %v291
    %v310 = vunpack.c.l.b16 %v271
    %v311 = vunpack.c.l.b16 %v272
    %v312 = vunpack.c.l.b16 %v273
    %v313 = vunpack.c.l.b16 %v274
    %v314 = vunpack.c.l.b16 %v275
    %v315 = vunpack.c.l.b16 %v276
    %v316 = vunpack.c.l.b16 %v277
    %v317 = vunpack.c.l.b16 %v278
    %v318 = vunpack.c.l.b16 %v279
    %v319 = vunpack.c.l.b16 %v280
    %v320 = vunpack.c.l.b16 %v281
    %v321 = vunpack.c.l.b16 %v282
    %v322 = vunpack.c.l.b16 %v283
    %v323 = vunpack.c.l.b16 %v284
    %v324 = vunpack.c.l.b16 %v285
    %v325 = vunpack.c.l.b16 %v286
    %v326 = vpack.c.b16 %v311, %v310
    %v327 = vpack.c.b16 %v313, %v312
    %v328 = vpack.c.b16 %v315, %v314
    %v329 = vpack.c.b16 %v317, %v316
    %v330 = vpack.c.b16 %v319, %v318
    %v331 = vpack.c.b16 %v321, %v320
    %v332 = vpack.c.b16 %v323, %v322
    %v333 = vpack.c.b16 %v325, %v324
    %342 = vmatprep.subr.bf16.mxu0 0
    %343 = vmatpush1.bf16.msra.mxu0 %v333
    %344 = vmatprep.subr.bf16.mxu0 0
    %345 = vmatpush1.bf16.msra.mxu0 %v332
    %346 = vmatprep.subr.bf16.mxu0 0
    %347 = vmatpush1.bf16.msra.mxu0 %v331
    %348 = vmatprep.subr.bf16.mxu0 0
    %349 = vmatpush1.bf16.msra.mxu0 %v330
    %350 = vmatprep.subr.bf16.mxu0 0
    %351 = vmatpush1.bf16.msra.mxu0 %v329
    %352 = vmatprep.subr.bf16.mxu0 0
    %353 = vmatpush1.bf16.msra.mxu0 %v328
    %354 = vmatprep.subr.bf16.mxu0 0
    %355 = vmatpush1.bf16.msra.mxu0 %v327
    %356 = vmatprep.subr.bf16.mxu0 0
    %357 = vmatpush1.bf16.msra.mxu0 %v326
    %358 = vmatprep.subr.bf16.mxu0 0
    %359 = vmatpush2.bf16.msra.mxu0 0
    %360 = vmatprep.subr.bf16.mxu0 0
    %361 = vmatpush2.bf16.msra.mxu0 0
    %362 = vmatprep.subr.bf16.mxu0 0
    %363 = vmatpush2.bf16.msra.mxu0 0
    %364 = vmatprep.subr.bf16.mxu0 0
    %365 = vmatpush2.bf16.msra.mxu0 0
    %366 = vmatprep.subr.bf16.mxu0 0
    %367 = vmatpush2.bf16.msra.mxu0 0
    %368 = vmatprep.subr.bf16.mxu0 0
    %369 = vmatpush2.bf16.msra.mxu0 0
    %370 = vmatprep.subr.bf16.mxu0 0
    %371 = vmatpush2.bf16.msra.mxu0 0
    %372 = vmatprep.subr.bf16.mxu0 0
    %373 = vmatpush2.bf16.msra.mxu0 0
    %374 = vmatprep.mubr.bf16.mxu0 0
    %375 = vmatmul.mubr.bf16.gmra.mxu0 %v270
    %v376 = vpop.f32.mrf.mxu0
    %v377 = vadd.f32 %v292, %v376
    %v378 = vpop.f32.mrf.mxu0
    %v379 = vpop.f32.mrf.mxu0
    %v380 = vpop.f32.mrf.mxu0
    %381 = vdwg.mxu0
    %v382 = vtanh.pop %v377
    %v383 = vld [vmem:[%s7] sm:$0x1]
    %v385 = vlaneseq
    %v386 = vshrl.u32 %v385, 7
    %v387 = vsub.s32 0, %v386
    %v388 = vrot.slane %v383, %v387
    %v390 = vmul.f32 %v382, %v388
    %v391 = vld [vmem:[%s8] sm:$0x1]
    %v393 = vlaneseq
    %v394 = vshrl.u32 %v393, 7
    %v395 = vsub.s32 0, %v394
    %v396 = vrot.slane %v391, %v395
    %v398 = vadd.f32 %v390, %v396
    %399 = vst [vmem:[#allocation10] sm:$0xff] %v398
    // Predicated region
    $region54: #{mu_forward.1} parent=1 // pred_check
      _
    $region55: #{mu_forward.1} parent=1 // pred_check_branch
      %401 = sbr.rel (0) target = $region57
    $region56: #{mu_forward.1} parent=1 // pred_region
      %s403 = ssub.s32 128, 128
      %404 = vsyncadd [#allocation4], %s403
      %s406 = sshll.u32 [#allocation10], 4
      %s407 = int_to_ptr.vmem [resolvable:$true] %s406
      %409 = dma.vmem_to_hbm [thread:$0]  %s407, 128, %s9, [#allocation4]
    $region57: #{mu_forward.1} parent=1 // pred_fallthru
      _
    // Predicated region
    $region58: #{mu_forward.1} parent=1 // pred_check
      _
    $region59: #{mu_forward.1} parent=1 // pred_check_branch
      %411 = sbr.rel (0) target = $region61
    $region60: #{mu_forward.1} parent=1 // pred_region
      %412 = dma.done [#allocation4], 128
    $region61: #{mu_forward.1} parent=1 // pred_fallthru
      _
    %413 = vsyncpa [#allocation3], 1
    %414 = vsyncpa [#allocation6], 1
    %415 = vsyncpa [#allocation9], 1
    %416 = vsyncpa [#allocation4], 1

</llo_original>
